<compile_context>
chip_gen: v7x
topology: tpu7x:2x2x1
jax: 0.10.0
libtpu: 0.0.40
codegen_flags: <defaults>
</compile_context>

<pallas_src>
import math

import jax
import jax.numpy as jnp
from jax.experimental import pallas as pl
from jax.experimental.pallas import tpu as pltpu

NEG_INF_SCALE = -1e30  # matches mask_logits in the PyTorch module


def _output_layer_kernel(m1_ref, m2_ref, m3_ref, cmask_ref, w_ref, out_ref):
    # m*_ref:    (TB, H, TL)   hidden on sublanes, context on lanes (native dtype)
    # cmask_ref: (TB, 1, TL)
    # w_ref:     (4, H, 1)     rows = [w1[:H], w1[H:], w2[:H], w2[H:]]  (resident)
    # out_ref:   (TB, 2, TL)   row 0 = start logits, row 1 = end logits (f32)
    f32 = jnp.float32
    m1 = m1_ref[...].astype(f32)
    m2 = m2_ref[...].astype(f32)
    m3 = m3_ref[...].astype(f32)

    w = w_ref[...].astype(f32)          # (4, H, 1)
    w1a, w1b, w2a, w2b = w[0], w[1], w[2], w[3]   # each (H, 1) -> broadcast over lanes

    # weight . cat(a, b) == w[:H].a + w[H:].b  (reduction over hidden = sublanes, XLU)
    start = jnp.sum(w1a * m1 + w1b * m2, axis=1, keepdims=True)   # (TB, 1, TL)
    end = jnp.sum(w2a * m1 + w2b * m3, axis=1, keepdims=True)     # (TB, 1, TL)

    # mask_logits: x + -1e30 * (1 - mask)  (fused; no extra HBM pass)
    neg = NEG_INF_SCALE * (1.0 - cmask_ref[...].astype(f32))      # (TB, 1, TL)

    out_ref[:, 0:1, :] = start + neg
    out_ref[:, 1:2, :] = end + neg


def _choose_blocks(B, H, L_pad, m_itemsize, budget_bytes=40 << 20):
    """Pick (TB, TL) so the double-buffered working set stays under `budget_bytes`
    while keeping per-step DMA as large/contiguous as possible (prefer TL = L_pad)."""

    def step_bytes(tb, tl):
        ins = 3 * tb * H * tl * m_itemsize + tb * tl * 4        # m1,m2,m3 + cmask
        outs = tb * 2 * tl * 4                                  # fused start/end (f32)
        return 2 * (ins + outs) + 4 * H * 4                     # x2 double-buffering

    # Lane tile: full extent if it fits, otherwise halve (stays a 128-multiple divisor).
    tl = L_pad
    while step_bytes(1, tl) > budget_bytes and tl % 2 == 0 and (tl // 2) % 128 == 0:
        tl //= 2

    # Batch tile: largest divisor of B that fits the budget.
    tb = 1
    for cand in range(B, 0, -1):
        if B % cand == 0 and step_bytes(cand, tl) <= budget_bytes:
            tb = cand
            break

    # Keep >=2 grid steps when possible so both v7x TensorCores get work.
    if (B // tb) * (L_pad // tl) < 2:
        if tb > 1:
            for cand in range(tb - 1, 0, -1):
                if B % cand == 0:
                    tb = cand
                    break
        elif tl % 256 == 0:
            tl //= 2
    return tb, tl


def output_layer_forward(m1, m2, m3, cmask, w1, w2):
    """m1/m2/m3: [B, H, L]; cmask: [B, L]; w1/w2: [2H]. Returns (start, end): [B, L] f32."""
    B, H, L = m1.shape
    assert m2.shape == (B, H, L) and m3.shape == (B, H, L)
    assert w1.shape == (2 * H,) and w2.shape == (2 * H,)
    assert cmask.shape == (B, L)

    # Pad the context axis up to a lane-dense multiple of 128 (padded positions are
    # masked to -1e30 anyway and sliced off at the end).
    L_pad = ((L + 127) // 128) * 128
    pad = L_pad - L
    cmask3 = cmask.reshape(B, 1, L)
    if pad:
        m1 = jnp.pad(m1, ((0, 0), (0, 0), (0, pad)))
        m2 = jnp.pad(m2, ((0, 0), (0, 0), (0, pad)))
        m3 = jnp.pad(m3, ((0, 0), (0, 0), (0, pad)))
        cmask3 = jnp.pad(cmask3, ((0, 0), (0, 0), (0, pad)))

    # Pre-split & pack weights: hidden on sublanes, size-1 lane axis, resident block.
    w_packed = jnp.stack([w1[:H], w1[H:], w2[:H], w2[H:]],
                         axis=0).astype(jnp.float32).reshape(4, H, 1)

    TB, TL = _choose_blocks(B, H, L_pad, jnp.dtype(m1.dtype).itemsize)
    grid = (B // TB, L_pad // TL)

    m_spec = pl.BlockSpec((TB, H, TL), lambda b, l: (b, 0, l))
    mask_spec = pl.BlockSpec((TB, 1, TL), lambda b, l: (b, 0, l))
    w_spec = pl.BlockSpec((4, H, 1), lambda b, l: (0, 0, 0))       # resident weights
    out_spec = pl.BlockSpec((TB, 2, TL), lambda b, l: (b, 0, l))   # fused start/end

    out = pl.pallas_call(
        _output_layer_kernel,
        out_shape=jax.ShapeDtypeStruct((B, 2, L_pad), jnp.float32),
        grid=grid,
        in_specs=[m_spec, m_spec, m_spec, mask_spec, w_spec],
        out_specs=out_spec,
        compiler_params=pltpu.CompilerParams(
            dimension_semantics=("parallel", "parallel"),
            vmem_limit_bytes=48 << 20),
    )(m1, m2, m3, cmask3, w_packed)   # NOTE: no dtype cast here — stream native dtype

    return out[:, 0, :L], out[:, 1, :L]


def _reference(m1, m2, m3, cmask, w1, w2):
    """Pure-JAX reference (same math as the PyTorch module)."""
    f32 = jnp.float32
    s = jnp.einsum("h,bhl->bl", w1.astype(f32),
                   jnp.concatenate([m1, m2], axis=1).astype(f32))
    e = jnp.einsum("h,bhl->bl", w2.astype(f32),
                   jnp.concatenate([m1, m3], axis=1).astype(f32))
    neg = NEG_INF_SCALE * (1.0 - cmask.astype(f32))
    return s + neg, e + neg


if __name__ == "__main__":
    key = jax.random.PRNGKey(0)
    k1, k2, k3, kw1, kw2, k4, k5, k6 = jax.random.split(key, 8)

    # --- Case 1: f32 inputs, L already a multiple of 128 (hidden_size=64 -> weights [128]).
    B, H, L = 2, 64, 128
    m1 = jax.random.normal(k1, (B, H, L), jnp.float32)
    m2 = jax.random.normal(k2, (B, H, L), jnp.float32)
    m3 = jax.random.normal(k3, (B, H, L), jnp.float32)
    lengths = jnp.array([L, L // 2])
    cmask = (jnp.arange(L)[None, :] < lengths[:, None]).astype(jnp.float32)

    # xavier_uniform_ on (2H, 1) then squeeze, matching the torch init
    bound = math.sqrt(6.0 / (2 * H + 1))
    w1 = jax.random.uniform(kw1, (2 * H,), jnp.float32, -bound, bound)
    w2 = jax.random.uniform(kw2, (2 * H,), jnp.float32, -bound, bound)

    start, end = output_layer_forward(m1, m2, m3, cmask, w1, w2)
    jax.block_until_ready((start, end))
    rs, re = _reference(m1, m2, m3, cmask, w1, w2)
    assert start.shape == (B, L) and end.shape == (B, L)
    assert bool(jnp.allclose(start, rs, rtol=1e-5, atol=1e-3))
    assert bool(jnp.allclose(end, re, rtol=1e-5, atol=1e-3))

    # --- Case 2: bf16 activations + non-128-multiple L (exercises native-dtype
    #             streaming and the lane-padding path).
    L2 = 100
    mm1 = jax.random.normal(k4, (B, H, L2), jnp.float32).astype(jnp.bfloat16)
    mm2 = jax.random.normal(k5, (B, H, L2), jnp.float32).astype(jnp.bfloat16)
    mm3 = jax.random.normal(k6, (B, H, L2), jnp.float32).astype(jnp.bfloat16)
    lengths2 = jnp.array([L2, 37])
    cmask2 = (jnp.arange(L2)[None, :] < lengths2[:, None]).astype(jnp.float32)

    s2, e2 = output_layer_forward(mm1, mm2, mm3, cmask2, w1, w2)
    jax.block_until_ready((s2, e2))
    rs2, re2 = _reference(mm1, mm2, mm3, cmask2, w1, w2)
    assert s2.shape == (B, L2) and e2.shape == (B, L2)
    assert bool(jnp.allclose(s2, rs2, rtol=1e-5, atol=2e-3))
    assert bool(jnp.allclose(e2, re2, rtol=1e-5, atol=2e-3))

    print("KERNEL_OK")
</pallas_src>

<mosaic_0001>
module attributes {stable_mosaic.version = 11 : i64} {
  func.func @_output_layer_kernel(%arg0: i32, %arg1: i32, %arg2: memref<1x64x128xf32, #tpu.memory_space<vmem>>, %arg3: memref<1x64x128xf32, #tpu.memory_space<vmem>>, %arg4: memref<1x64x128xf32, #tpu.memory_space<vmem>>, %arg5: memref<1x1x128xf32, #tpu.memory_space<vmem>>, %arg6: memref<4x64x1xf32, #tpu.memory_space<vmem>>, %arg7: memref<1x2x128xf32, #tpu.memory_space<vmem>>) attributes {dimension_semantics = [#tpu.dimension_semantics<parallel>, #tpu.dimension_semantics<parallel>], iteration_bounds = array<i64: 2, 1>, scalar_prefetch = 0 : i64, scratch_operands = 0 : i64, tpu.core_type = #tpu.core_type<tc>, window_params = [{transform_indices = @transform_0, window_bounds = array<i64: 1, 64, 128>}, {transform_indices = @transform_1, window_bounds = array<i64: 1, 64, 128>}, {transform_indices = @transform_2, window_bounds = array<i64: 1, 64, 128>}, {transform_indices = @transform_3, window_bounds = array<i64: 1, 1, 128>}, {pipeline_mode = #tpu.pipeline_mode<synchronous>, transform_indices = @transform_4, window_bounds = array<i64: 4, 64, 1>}, {transform_indices = @transform_5, window_bounds = array<i64: 1, 2, 128>}]} {
    %c0 = arith.constant 0 : index
    %c0_0 = arith.constant 0 : index
    %c0_1 = arith.constant 0 : index
    %0 = vector.load %arg2[%c0, %c0_0, %c0_1] : memref<1x64x128xf32, #tpu.memory_space<vmem>>, vector<1x64x128xf32>
    %c0_2 = arith.constant 0 : index
    %c0_3 = arith.constant 0 : index
    %c0_4 = arith.constant 0 : index
    %1 = vector.load %arg3[%c0_2, %c0_3, %c0_4] : memref<1x64x128xf32, #tpu.memory_space<vmem>>, vector<1x64x128xf32>
    %c0_5 = arith.constant 0 : index
    %c0_6 = arith.constant 0 : index
    %c0_7 = arith.constant 0 : index
    %2 = vector.load %arg4[%c0_5, %c0_6, %c0_7] : memref<1x64x128xf32, #tpu.memory_space<vmem>>, vector<1x64x128xf32>
    %c0_8 = arith.constant 0 : index
    %c0_9 = arith.constant 0 : index
    %c0_10 = arith.constant 0 : index
    %3 = vector.load %arg6[%c0_8, %c0_9, %c0_10] : memref<4x64x1xf32, #tpu.memory_space<vmem>>, vector<4x64x1xf32>
    %4 = vector.extract_strided_slice %3 {offsets = [0, 0, 0], sizes = [1, 64, 1], strides = [1, 1, 1]} : vector<4x64x1xf32> to vector<1x64x1xf32>
    %5 = vector.shape_cast %4 : vector<1x64x1xf32> to vector<64x1xf32>
    %6 = vector.extract_strided_slice %3 {offsets = [1, 0, 0], sizes = [1, 64, 1], strides = [1, 1, 1]} : vector<4x64x1xf32> to vector<1x64x1xf32>
    %7 = vector.shape_cast %6 : vector<1x64x1xf32> to vector<64x1xf32>
    %8 = vector.extract_strided_slice %3 {offsets = [2, 0, 0], sizes = [1, 64, 1], strides = [1, 1, 1]} : vector<4x64x1xf32> to vector<1x64x1xf32>
    %9 = vector.shape_cast %8 : vector<1x64x1xf32> to vector<64x1xf32>
    %10 = vector.extract_strided_slice %3 {offsets = [3, 0, 0], sizes = [1, 64, 1], strides = [1, 1, 1]} : vector<4x64x1xf32> to vector<1x64x1xf32>
    %11 = vector.shape_cast %10 : vector<1x64x1xf32> to vector<64x1xf32>
    %12 = vector.shape_cast %5 : vector<64x1xf32> to vector<1x64x1xf32>
    %13 = vector.broadcast %12 : vector<1x64x1xf32> to vector<1x64x128xf32>
    %14 = arith.mulf %13, %0 : vector<1x64x128xf32>
    %15 = vector.shape_cast %7 : vector<64x1xf32> to vector<1x64x1xf32>
    %16 = vector.broadcast %15 : vector<1x64x1xf32> to vector<1x64x128xf32>
    %17 = arith.mulf %16, %1 : vector<1x64x128xf32>
    %18 = arith.addf %14, %17 : vector<1x64x128xf32>
    %cst = arith.constant dense<0.000000e+00> : vector<1x128xf32>
    %19 = vector.multi_reduction <add>, %18, %cst [1] : vector<1x64x128xf32> to vector<1x128xf32>
    %20 = vector.shape_cast %19 : vector<1x128xf32> to vector<1x1x128xf32>
    %21 = vector.shape_cast %9 : vector<64x1xf32> to vector<1x64x1xf32>
    %22 = vector.broadcast %21 : vector<1x64x1xf32> to vector<1x64x128xf32>
    %23 = arith.mulf %22, %0 : vector<1x64x128xf32>
    %24 = vector.shape_cast %11 : vector<64x1xf32> to vector<1x64x1xf32>
    %25 = vector.broadcast %24 : vector<1x64x1xf32> to vector<1x64x128xf32>
    %26 = arith.mulf %25, %2 : vector<1x64x128xf32>
    %27 = arith.addf %23, %26 : vector<1x64x128xf32>
    %cst_11 = arith.constant dense<0.000000e+00> : vector<1x128xf32>
    %28 = vector.multi_reduction <add>, %27, %cst_11 [1] : vector<1x64x128xf32> to vector<1x128xf32>
    %29 = vector.shape_cast %28 : vector<1x128xf32> to vector<1x1x128xf32>
    %c0_12 = arith.constant 0 : index
    %c0_13 = arith.constant 0 : index
    %c0_14 = arith.constant 0 : index
    %30 = vector.load %arg5[%c0_12, %c0_13, %c0_14] : memref<1x1x128xf32, #tpu.memory_space<vmem>>, vector<1x1x128xf32>
    %cst_15 = arith.constant 1.000000e+00 : f32
    %31 = vector.broadcast %cst_15 : f32 to vector<1x1x128xf32>
    %32 = arith.subf %31, %30 : vector<1x1x128xf32>
    %cst_16 = arith.constant -1.000000e+30 : f32
    %33 = vector.broadcast %cst_16 : f32 to vector<1x1x128xf32>
    %34 = arith.mulf %33, %32 : vector<1x1x128xf32>
    %35 = arith.addf %20, %34 : vector<1x1x128xf32>
    %c0_17 = arith.constant 0 : index
    %c0_18 = arith.constant 0 : index
    %c0_19 = arith.constant 0 : index
    %36 = vector.load %arg7[%c0_17, %c0_18, %c0_19] : memref<1x2x128xf32, #tpu.memory_space<vmem>>, vector<1x1x128xf32>
    tpu.vector_store %arg7[%c0_17, %c0_18, %c0_19], %35 {strides = array<i32>} : memref<1x2x128xf32, #tpu.memory_space<vmem>>, vector<1x1x128xf32>,
    %37 = arith.addf %29, %34 : vector<1x1x128xf32>
    %c0_20 = arith.constant 0 : index
    %c1 = arith.constant 1 : index
    %c0_21 = arith.constant 0 : index
    %38 = vector.load %arg7[%c0_20, %c1, %c0_21] : memref<1x2x128xf32, #tpu.memory_space<vmem>>, vector<1x1x128xf32>
    tpu.vector_store %arg7[%c0_20, %c1, %c0_21], %37 {strides = array<i32>} : memref<1x2x128xf32, #tpu.memory_space<vmem>>, vector<1x1x128xf32>,
    return
  }
  func.func @transform_0(%arg0: i32, %arg1: i32) -> (i32, i32, i32) {
    %c0_i32 = arith.constant 0 : i32
    %c0_i32_0 = arith.constant 0 : i32
    return %arg0, %c0_i32, %arg1 : i32, i32, i32
  }
  func.func @transform_1(%arg0: i32, %arg1: i32) -> (i32, i32, i32) {
    %c0_i32 = arith.constant 0 : i32
    %c0_i32_0 = arith.constant 0 : i32
    return %arg0, %c0_i32, %arg1 : i32, i32, i32
  }
  func.func @transform_2(%arg0: i32, %arg1: i32) -> (i32, i32, i32) {
    %c0_i32 = arith.constant 0 : i32
    %c0_i32_0 = arith.constant 0 : i32
    return %arg0, %c0_i32, %arg1 : i32, i32, i32
  }
  func.func @transform_3(%arg0: i32, %arg1: i32) -> (i32, i32, i32) {
    %c0_i32 = arith.constant 0 : i32
    %c0_i32_0 = arith.constant 0 : i32
    return %arg0, %c0_i32, %arg1 : i32, i32, i32
  }
  func.func @transform_4(%arg0: i32, %arg1: i32) -> (i32, i32, i32) {
    %c0_i32 = arith.constant 0 : i32
    %c0_i32_0 = arith.constant 0 : i32
    %c0_i32_1 = arith.constant 0 : i32
    %c0_i32_2 = arith.constant 0 : i32
    return %c0_i32, %c0_i32_0, %c0_i32_1 : i32, i32, i32
  }
  func.func @transform_5(%arg0: i32, %arg1: i32) -> (i32, i32, i32) {
    %c0_i32 = arith.constant 0 : i32
    %c0_i32_0 = arith.constant 0 : i32
    return %arg0, %c0_i32, %arg1 : i32, i32, i32
  }
}

</mosaic_0001>

<llo_original>
// kernel: tpu_custom_call.1
$region0: #{tpu_custom_call.1}
  #allocation0 [shape = 'u32[]', space=smem, size = 0x4, offset = 0x4, fixed_abs, tag = 'smem constant byte address 0x4 - core index']
  #allocation1 [shape = 'u32[144,128]{1,0:T(1,128)}', space=vmem, size = 0x12000, scoped, tag = 'internal scratch']
  %s0 = inlined_call_operand.vmem [shape: f32[2,64,128], index: 0, kind: input, shape index: {}]
  %s1 = inlined_call_operand.vmem [shape: f32[2,64,128], index: 1, kind: input, shape index: {}]
  %s2 = inlined_call_operand.hbm [shape: f32[2,64,128], index: 2, kind: input, shape index: {}]
  %s3 = inlined_call_operand.vmem [shape: f32[2,1,128], index: 3, kind: input, shape index: {}]
  %s4 = inlined_call_operand.vmem [shape: f32[4,64,1], index: 4, kind: input, shape index: {}]
  %s5 = inlined_call_operand.hbm [shape: f32[2,2,128], index: 5, kind: output, shape index: {}]
  %s6 = sld [smem:[#allocation0]]
  $region57: #{tpu_custom_call.1} parent=0
    _
  %s8 = ssub.s32 1, %s6
  %s9 = scalar_select 0, %s8, %s6
  $region1: #{tpu_custom_call.1} parent=0
    #allocation2 [shape = 'u8[65536]{0}', space=vmem, size = 0x10000, scoped, tag = 'input window, operand 2']
    #allocation3 [shape = 's32[2]{0}', space=sflag, size = 0x8, scoped, tag = 'scoped memory for tpu_custom_call.1']
    #allocation4 [shape = 's32[2]{0}', space=sflag, size = 0x8, scoped, tag = 'scoped memory for tpu_custom_call.1']
    #allocation5 [shape = 'u8[2048]{0}', space=vmem, size = 0x800, scoped, tag = 'output window, operand 0']
    %10 = vsyncpa [#allocation3], 0
    %s11 = scalar_lea.sflag [#allocation3], 1
    %12 = vsyncpa %s11, 0
    %13 = vsyncpa [#allocation4], 0
    %s14 = scalar_lea.sflag [#allocation4], 1
    %15 = vsyncpa %s14, 0
    loop: start=0, step=1, limit=4
    $region2: #{tpu_custom_call.1} parent=1 // loop_pre_header
      _
    $region3: #{tpu_custom_call.1} parent=1 // loop_header
      %s17 = sphi 0, %s21
      %p18 = scmp.ge.s32.totalorder %s17, 4
      %s24 = sphi 0, %s36
      %s25 = sphi 0, %s32
      %s26 = sphi 0, %s24
      %s27 = sphi 0, %s25
      %s28 = sphi 0, %s26
      %s29 = sphi 0, %s27
      %s41 = sphi 0, %s43
      %s44 = sphi 0, %s41
      %s45 = sphi 0, %s44
      %s61 = sphi 0, %s45
      %s69 = sphi 0, %s71
      %s72 = sphi 0, %s69
      %s73 = sphi 0, %s72
      %s89 = sphi 0, %s73
      %s97 = sphi 0, %s99
      %s100 = sphi 0, %s97
      %s101 = sphi 0, %s100
      %s117 = sphi 0, %s101
      %s125 = sphi 0, %s127
      %s128 = sphi 0, %s125
      %s129 = sphi 0, %s128
      %s145 = sphi 0, %s129
      %s149 = sphi 0, %s149
      %s151 = sphi 0, %s149
      %s152 = sphi 0, %s151
      %s166 = sphi 0, %s152
      %s174 = sphi 0, %s176
      %s177 = sphi 0, %s174
      %s178 = sphi 0, %s177
      %s194 = sphi 0, %s178
    $region4: #{tpu_custom_call.1} parent=1 // loop_header_branch
      %20 = sbr.rel (%p18) target = $region8
    $region5: #{tpu_custom_call.1} parent=1 // loop_body
      %s22 = ssub.s32 %s17, 1
      %s23 = ssub.s32 %s17, 2
      %s30 = sadd.s32 1, %s25
      %p31 = scmp.ge.s32.totalorder %s30, 1
      %s32 = scalar_select %p31, 0, %s30
      %s33 = sadd.s32 1, %s24
      %s34 = scalar_select %p31, %s33, %s24
      %p35 = scmp.ge.s32.totalorder %s34, 2
      %s36 = scalar_select %p35, 0, %s34
      %s37 = ssub.s32 %s24, %s36
      %s38 = ssub.s32 %s25, %s32
      %s39 = sor.u32 %s37, %s38
      %p40 = scmp.eq.s32.totalorder %s39, 0
      %s42 = sadd.s32 %s41, 1
      %s43 = scalar_select %p40, %s41, %s42
      %p46 = pneg %p40
      %p47 = scmp.eq.s32.totalorder %s17, 1
      %p48 = por %p46, %p47
      %p49 = scmp.ne.s32.totalorder %s41, %s44
      %p50 = scmp.eq.s32.totalorder %s17, 0
      %p51 = por %p49, %p50
      %p52 = scmp.ne.s32.totalorder %s41, %s44
      %p53 = scmp.eq.s32.totalorder %s22, 1
      %p54 = por %p52, %p53
      %p55 = scmp.ne.s32.totalorder %s44, %s45
      %p56 = scmp.eq.s32.totalorder %s22, 0
      %p57 = por %p55, %p56
      %p58 = scmp.ne.s32.totalorder %s44, %s45
      %p59 = scmp.eq.s32.totalorder %s23, 1
      %p60 = por %p58, %p59
      %p62 = scmp.ne.s32.totalorder %s45, %s61
      %p63 = scmp.eq.s32.totalorder %s23, 0
      %p64 = por %p62, %p63
      %s65 = ssub.s32 %s24, %s36
      %s66 = ssub.s32 %s25, %s32
      %s67 = sor.u32 %s65, %s66
      %p68 = scmp.eq.s32.totalorder %s67, 0
      %s70 = sadd.s32 %s69, 1
      %s71 = scalar_select %p68, %s69, %s70
      %p74 = pneg %p68
      %p75 = scmp.eq.s32.totalorder %s17, 1
      %p76 = por %p74, %p75
      %p77 = scmp.ne.s32.totalorder %s69, %s72
      %p78 = scmp.eq.s32.totalorder %s17, 0
      %p79 = por %p77, %p78
      %p80 = scmp.ne.s32.totalorder %s69, %s72
      %p81 = scmp.eq.s32.totalorder %s22, 1
      %p82 = por %p80, %p81
      %p83 = scmp.ne.s32.totalorder %s72, %s73
      %p84 = scmp.eq.s32.totalorder %s22, 0
      %p85 = por %p83, %p84
      %p86 = scmp.ne.s32.totalorder %s72, %s73
      %p87 = scmp.eq.s32.totalorder %s23, 1
      %p88 = por %p86, %p87
      %p90 = scmp.ne.s32.totalorder %s73, %s89
      %p91 = scmp.eq.s32.totalorder %s23, 0
      %p92 = por %p90, %p91
      %s93 = ssub.s32 %s24, %s36
      %s94 = ssub.s32 %s25, %s32
      %s95 = sor.u32 %s93, %s94
      %p96 = scmp.eq.s32.totalorder %s95, 0
      %s98 = sadd.s32 %s97, 1
      %s99 = scalar_select %p96, %s97, %s98
      %p102 = pneg %p96
      %p103 = scmp.eq.s32.totalorder %s17, 1
      %p104 = por %p102, %p103
      %p105 = scmp.ne.s32.totalorder %s97, %s100
      %p106 = scmp.eq.s32.totalorder %s17, 0
      %p107 = por %p105, %p106
      %p108 = scmp.ne.s32.totalorder %s97, %s100
      %p109 = scmp.eq.s32.totalorder %s22, 1
      %p110 = por %p108, %p109
      %p111 = scmp.ne.s32.totalorder %s100, %s101
      %p112 = scmp.eq.s32.totalorder %s22, 0
      %p113 = por %p111, %p112
      %p114 = scmp.ne.s32.totalorder %s100, %s101
      %p115 = scmp.eq.s32.totalorder %s23, 1
      %p116 = por %p114, %p115
      %p118 = scmp.ne.s32.totalorder %s101, %s117
      %p119 = scmp.eq.s32.totalorder %s23, 0
      %p120 = por %p118, %p119
      %s121 = ssub.s32 %s24, %s36
      %s122 = ssub.s32 %s25, %s32
      %s123 = sor.u32 %s121, %s122
      %p124 = scmp.eq.s32.totalorder %s123, 0
      %s126 = sadd.s32 %s125, 1
      %s127 = scalar_select %p124, %s125, %s126
      %p130 = pneg %p124
      %p131 = scmp.eq.s32.totalorder %s17, 1
      %p132 = por %p130, %p131
      %p133 = scmp.ne.s32.totalorder %s125, %s128
      %p134 = scmp.eq.s32.totalorder %s17, 0
      %p135 = por %p133, %p134
      %p136 = scmp.ne.s32.totalorder %s125, %s128
      %p137 = scmp.eq.s32.totalorder %s22, 1
      %p138 = por %p136, %p137
      %p139 = scmp.ne.s32.totalorder %s128, %s129
      %p140 = scmp.eq.s32.totalorder %s22, 0
      %p141 = por %p139, %p140
      %p142 = scmp.ne.s32.totalorder %s128, %s129
      %p143 = scmp.eq.s32.totalorder %s23, 1
      %p144 = por %p142, %p143
      %p146 = scmp.ne.s32.totalorder %s129, %s145
      %p147 = scmp.eq.s32.totalorder %s23, 0
      %p148 = por %p146, %p147
      %s150 = sadd.s32 %s149, 1
      %p153 = scmp.eq.s32.totalorder %s17, 1
      %p154 = scmp.ne.s32.totalorder %s149, %s151
      %p155 = scmp.eq.s32.totalorder %s17, 0
      %p156 = por %p154, %p155
      %p157 = scmp.ne.s32.totalorder %s149, %s151
      %p158 = scmp.eq.s32.totalorder %s22, 1
      %p159 = por %p157, %p158
      %p160 = scmp.ne.s32.totalorder %s151, %s152
      %p161 = scmp.eq.s32.totalorder %s22, 0
      %p162 = por %p160, %p161
      %p163 = scmp.ne.s32.totalorder %s151, %s152
      %p164 = scmp.eq.s32.totalorder %s23, 1
      %p165 = por %p163, %p164
      %p167 = scmp.ne.s32.totalorder %s152, %s166
      %p168 = scmp.eq.s32.totalorder %s23, 0
      %p169 = por %p167, %p168
      %s170 = ssub.s32 %s24, %s36
      %s171 = ssub.s32 %s25, %s32
      %s172 = sor.u32 %s170, %s171
      %p173 = scmp.eq.s32.totalorder %s172, 0
      %s175 = sadd.s32 %s174, 1
      %s176 = scalar_select %p173, %s174, %s175
      %p179 = pneg %p173
      %p180 = scmp.eq.s32.totalorder %s17, 1
      %p181 = por %p179, %p180
      %p182 = scmp.ne.s32.totalorder %s174, %s177
      %p183 = scmp.eq.s32.totalorder %s17, 0
      %p184 = por %p182, %p183
      %p185 = scmp.ne.s32.totalorder %s174, %s177
      %p186 = scmp.eq.s32.totalorder %s22, 1
      %p187 = por %p185, %p186
      %p188 = scmp.ne.s32.totalorder %s177, %s178
      %p189 = scmp.eq.s32.totalorder %s22, 0
      %p190 = por %p188, %p189
      %p191 = scmp.ne.s32.totalorder %s177, %s178
      %p192 = scmp.eq.s32.totalorder %s23, 1
      %p193 = por %p191, %p192
      %p195 = scmp.ne.s32.totalorder %s178, %s194
      %p196 = scmp.eq.s32.totalorder %s23, 0
      %p197 = por %p195, %p196
      %p198 = scmp.le.s32.totalorder 1, %s17
      %p199 = scmp.lt.s32.totalorder %s17, 3
      %p200 = pnand %p198, %p199
      %p201 = pneg %p200
      // Predicated region
      $region9: #{tpu_custom_call.1} parent=5 // pred_check
        _
      $region10: #{tpu_custom_call.1} parent=5 // pred_check_branch
        %203 = sbr.rel (%p200) target = $region12
      $region11: #{tpu_custom_call.1} parent=5 // pred_region
        %s204 = ssub.s32 %s17, 1
        // Predicated region
        $region13: #{tpu_custom_call.1} parent=11 // pred_check
          %p205 = pneg %p162
        $region14: #{tpu_custom_call.1} parent=11 // pred_check_branch
          %207 = sbr.rel (%p205) target = $region16
        $region15: #{tpu_custom_call.1} parent=11 // pred_region
          _
        $region16: #{tpu_custom_call.1} parent=11 // pred_fallthru
          _
      $region12: #{tpu_custom_call.1} parent=5 // pred_fallthru
        _
      %p208 = scmp.lt.s32.totalorder %s17, 2
      // Predicated region
      $region17: #{tpu_custom_call.1} parent=5 // pred_check
        %p209 = pneg %p208
      $region18: #{tpu_custom_call.1} parent=5 // pred_check_branch
        %211 = sbr.rel (%p209) target = $region20
      $region19: #{tpu_custom_call.1} parent=5 // pred_region
        // Predicated region
        $region21: #{tpu_custom_call.1} parent=19 // pred_check
          %p212 = pneg %p51
        $region22: #{tpu_custom_call.1} parent=19 // pred_check_branch
          %214 = sbr.rel (%p212) target = $region24
        $region23: #{tpu_custom_call.1} parent=19 // pred_region
          %p215 = scmp.lt.s32.totalorder %s24, 1
          %s216 = scalar_select %p215, %s24, 1
          %p217 = scmp.lt.s32.totalorder %s25, 0
          %s218 = scalar_select %p217, %s25, 0
          %s219 = smul.addr %s216, 8
          %s220 = sadd.s32 %s218, %s219
          %s221 = smul.addr %s220, 8
          %s222 = scalar_lea.vmem %s0, %s221
        $region24: #{tpu_custom_call.1} parent=19 // pred_fallthru
          _
        // Predicated region
        $region25: #{tpu_custom_call.1} parent=19 // pred_check
          %p223 = pneg %p79
        $region26: #{tpu_custom_call.1} parent=19 // pred_check_branch
          %225 = sbr.rel (%p223) target = $region28
        $region27: #{tpu_custom_call.1} parent=19 // pred_region
          %p226 = scmp.lt.s32.totalorder %s24, 1
          %s227 = scalar_select %p226, %s24, 1
          %p228 = scmp.lt.s32.totalorder %s25, 0
          %s229 = scalar_select %p228, %s25, 0
          %s230 = smul.addr %s227, 8
          %s231 = sadd.s32 %s229, %s230
          %s232 = smul.addr %s231, 8
          %s233 = scalar_lea.vmem %s1, %s232
        $region28: #{tpu_custom_call.1} parent=19 // pred_fallthru
          _
        // Predicated region
        $region29: #{tpu_custom_call.1} parent=19 // pred_check
          %p234 = pneg %p107
        $region30: #{tpu_custom_call.1} parent=19 // pred_check_branch
          %236 = sbr.rel (%p234) target = $region32
        $region31: #{tpu_custom_call.1} parent=19 // pred_region
          %s237 = sand.u32 %s97, 1
          %s238 = scalar_lea.sflag [#allocation3], %s237
          %s239 = sand.u32 %s97, 1
          %s240 = smul.addr %s239, 64
          %s241 = scalar_lea.vmem [#allocation2], %s240
          %s243 = ssub.s32 1024, 1024
          %244 = vsyncadd %s238, %s243
          %s245 = smul.addr %s24, 8
          %s246 = sadd.s32 %s25, %s245
          %s247 = smul.addr %s246, 128
          %s248 = scalar_lea.hbm %s2, %s247
          %s249 = sshll.u32 %s241, 4
          %s250 = int_to_ptr.vmem [resolvable:$true] %s249
          %255 = dma.hbm_to_vmem [thread:$0]  %s248, 1024, %s250, %s238, 128, 128, 8
        $region32: #{tpu_custom_call.1} parent=19 // pred_fallthru
          _
        // Predicated region
        $region33: #{tpu_custom_call.1} parent=19 // pred_check
          %p256 = pneg %p135
        $region34: #{tpu_custom_call.1} parent=19 // pred_check_branch
          %258 = sbr.rel (%p256) target = $region36
        $region35: #{tpu_custom_call.1} parent=19 // pred_region
          %p259 = scmp.lt.s32.totalorder %s24, 1
          %s260 = scalar_select %p259, %s24, 1
          %p261 = scmp.lt.s32.totalorder %s25, 0
          %s262 = scalar_select %p261, %s25, 0
          %s263 = sadd.s32 %s262, %s260
          %s264 = scalar_lea.vmem %s3, %s263
        $region36: #{tpu_custom_call.1} parent=19 // pred_fallthru
          _
      $region20: #{tpu_custom_call.1} parent=5 // pred_fallthru
        _
      %p265 = scmp.le.s32.totalorder 1, %s17
      %p266 = scmp.lt.s32.totalorder %s17, 3
      %p267 = pnand %p265, %p266
      %p268 = pneg %p267
      // Predicated region
      $region37: #{tpu_custom_call.1} parent=5 // pred_check
        _
      $region38: #{tpu_custom_call.1} parent=5 // pred_check_branch
        %270 = sbr.rel (%p267) target = $region40
      $region39: #{tpu_custom_call.1} parent=5 // pred_region
        %s271 = ssub.s32 %s17, 1
        %s272 = sand.u32 %s100, 1
        %s273 = scalar_lea.sflag [#allocation3], %s272
        %s274 = sand.u32 %s100, 1
        %s275 = smul.addr %s274, 64
        %s276 = scalar_lea.vmem [#allocation2], %s275
        // Predicated region
        $region41: #{tpu_custom_call.1} parent=39 // pred_check
          %p277 = pneg %p113
        $region42: #{tpu_custom_call.1} parent=39 // pred_check_branch
          %279 = sbr.rel (%p277) target = $region44
        $region43: #{tpu_custom_call.1} parent=39 // pred_region
          %280 = dma.done %s273, 1024
        $region44: #{tpu_custom_call.1} parent=39 // pred_fallthru
          _
        %p281 = scmp.lt.s32.totalorder %s26, 1
        %s282 = scalar_select %p281, %s26, 1
        %p283 = scmp.lt.s32.totalorder %s27, 0
        %s284 = scalar_select %p283, %s27, 0
        %s285 = smul.addr %s282, 8
        %s286 = sadd.s32 %s284, %s285
        %s287 = smul.addr %s286, 8
        %s288 = scalar_lea.vmem %s0, %s287
        %p289 = pneg %p57
        %p290 = pneg %p54
        %p291 = scmp.lt.s32.totalorder %s26, 1
        %s292 = scalar_select %p291, %s26, 1
        %p293 = scmp.lt.s32.totalorder %s27, 0
        %s294 = scalar_select %p293, %s27, 0
        %s295 = smul.addr %s292, 8
        %s296 = sadd.s32 %s294, %s295
        %s297 = smul.addr %s296, 8
        %s298 = scalar_lea.vmem %s1, %s297
        %p299 = pneg %p85
        %p300 = pneg %p82
        %s301 = sand.u32 %s100, 1
        %s302 = scalar_lea.sflag [#allocation3], %s301
        %s303 = sand.u32 %s100, 1
        %s304 = smul.addr %s303, 64
        %s305 = scalar_lea.vmem [#allocation2], %s304
        %p306 = pneg %p113
        %p307 = pneg %p110
        %p308 = scmp.lt.s32.totalorder %s26, 1
        %s309 = scalar_select %p308, %s26, 1
        %p310 = scmp.lt.s32.totalorder %s27, 0
        %s311 = scalar_select %p310, %s27, 0
        %s312 = sadd.s32 %s311, %s309
        %s313 = scalar_lea.vmem %s3, %s312
        %p314 = pneg %p141
        %p315 = pneg %p138
        %p316 = pneg %p162
        %p317 = pneg %p159
        %p318 = pneg %p190
        %p319 = pneg %p187
        %s320 = sand.u32 %s177, 1
        %s321 = scalar_lea.sflag [#allocation4], %s320
        %s322 = sand.u32 %s177, 1
        %s323 = smul.addr %s322, 2
        %s324 = scalar_lea.vmem [#allocation5], %s323
        %p325 = scmp.lt.s32.totalorder %s26, 1
        %s326 = scalar_select %p325, %s26, 1
        %p327 = scmp.lt.s32.totalorder %s27, 0
        %s328 = scalar_select %p327, %s27, 0
        %s329 = smul.addr %s326, 8
        %s330 = sadd.s32 %s328, %s329
        %s331 = smul.addr %s330, 8
        %s332 = scalar_lea.vmem %s0, %s331
        %p333 = scmp.lt.s32.totalorder %s26, 1
        %s334 = scalar_select %p333, %s26, 1
        %p335 = scmp.lt.s32.totalorder %s27, 0
        %s336 = scalar_select %p335, %s27, 0
        %s337 = smul.addr %s334, 8
        %s338 = sadd.s32 %s336, %s337
        %s339 = smul.addr %s338, 8
        %s340 = scalar_lea.vmem %s1, %s339
        %p341 = scmp.lt.s32.totalorder %s26, 1
        %s342 = scalar_select %p341, %s26, 1
        %p343 = scmp.lt.s32.totalorder %s27, 0
        %s344 = scalar_select %p343, %s27, 0
        %s345 = sadd.s32 %s344, %s342
        %s346 = scalar_lea.vmem %s3, %s345
        %v347 = vld [vmem:[%s332] sm:$0xff]
        %v348 = vld [vmem:[%s332 + $0x8] sm:$0xff]
        %v349 = vld [vmem:[%s332 + $0x10] sm:$0xff]
        %v350 = vld [vmem:[%s332 + $0x18] sm:$0xff]
        %v351 = vld [vmem:[%s332 + $0x20] sm:$0xff]
        %v352 = vld [vmem:[%s332 + $0x28] sm:$0xff]
        %v353 = vld [vmem:[%s332 + $0x30] sm:$0xff]
        %v354 = vld [vmem:[%s332 + $0x38] sm:$0xff]
        %v355 = vld [vmem:[%s340] sm:$0xff]
        %v356 = vld [vmem:[%s340 + $0x8] sm:$0xff]
        %v357 = vld [vmem:[%s340 + $0x10] sm:$0xff]
        %v358 = vld [vmem:[%s340 + $0x18] sm:$0xff]
        %v359 = vld [vmem:[%s340 + $0x20] sm:$0xff]
        %v360 = vld [vmem:[%s340 + $0x28] sm:$0xff]
        %v361 = vld [vmem:[%s340 + $0x30] sm:$0xff]
        %v362 = vld [vmem:[%s340 + $0x38] sm:$0xff]
        %v363 = vld [vmem:[%s276] sm:$0xff]
        %v364 = vld [vmem:[%s276 + $0x8] sm:$0xff]
        %v365 = vld [vmem:[%s276 + $0x10] sm:$0xff]
        %v366 = vld [vmem:[%s276 + $0x18] sm:$0xff]
        %v367 = vld [vmem:[%s276 + $0x20] sm:$0xff]
        %v368 = vld [vmem:[%s276 + $0x28] sm:$0xff]
        %v369 = vld [vmem:[%s276 + $0x30] sm:$0xff]
        %v370 = vld [vmem:[%s276 + $0x38] sm:$0xff]
        %v371 = vld [vmem:[%s4] sm:$0xff]
        %v372 = vld [vmem:[%s4 + $0x8] sm:$0xff]
        %v373 = vld [vmem:[%s4 + $0x10] sm:$0xff]
        %v374 = vld [vmem:[%s4 + $0x18] sm:$0xff]
        %v375 = vld [vmem:[%s4 + $0x20] sm:$0xff]
        %v376 = vld [vmem:[%s4 + $0x28] sm:$0xff]
        %v377 = vld [vmem:[%s4 + $0x30] sm:$0xff]
        %v378 = vld [vmem:[%s4 + $0x38] sm:$0xff]
        %v379 = vld [vmem:[%s4 + $0x40] sm:$0xff]
        %v380 = vld [vmem:[%s4 + $0x48] sm:$0xff]
        %v381 = vld [vmem:[%s4 + $0x50] sm:$0xff]
        %v382 = vld [vmem:[%s4 + $0x58] sm:$0xff]
        %v383 = vld [vmem:[%s4 + $0x60] sm:$0xff]
        %v384 = vld [vmem:[%s4 + $0x68] sm:$0xff]
        %v385 = vld [vmem:[%s4 + $0x70] sm:$0xff]
        %v386 = vld [vmem:[%s4 + $0x78] sm:$0xff]
        %v387 = vld [vmem:[%s4 + $0x80] sm:$0xff]
        %v388 = vld [vmem:[%s4 + $0x88] sm:$0xff]
        %v389 = vld [vmem:[%s4 + $0x90] sm:$0xff]
        %v390 = vld [vmem:[%s4 + $0x98] sm:$0xff]
        %v391 = vld [vmem:[%s4 + $0xa0] sm:$0xff]
        %v392 = vld [vmem:[%s4 + $0xa8] sm:$0xff]
        %v393 = vld [vmem:[%s4 + $0xb0] sm:$0xff]
        %v394 = vld [vmem:[%s4 + $0xb8] sm:$0xff]
        %v395 = vld [vmem:[%s4 + $0xc0] sm:$0xff]
        %v396 = vld [vmem:[%s4 + $0xc8] sm:$0xff]
        %v397 = vld [vmem:[%s4 + $0xd0] sm:$0xff]
        %v398 = vld [vmem:[%s4 + $0xd8] sm:$0xff]
        %v399 = vld [vmem:[%s4 + $0xe0] sm:$0xff]
        %v400 = vld [vmem:[%s4 + $0xe8] sm:$0xff]
        %v401 = vld [vmem:[%s4 + $0xf0] sm:$0xff]
        %v402 = vld [vmem:[%s4 + $0xf8] sm:$0xff]
        %404 = vset.pattern.permute.xlu0 0
        %405 = vperm.xlu0 %404, %v371
        %v406 = vpop.permute.xlu0 %405
        %409 = vset.pattern.permute.xlu0 0
        %410 = vperm.xlu0 %409, %v372
        %v411 = vpop.permute.xlu0 %410
        %414 = vset.pattern.permute.xlu0 0
        %415 = vperm.xlu0 %414, %v373
        %v416 = vpop.permute.xlu0 %415
        %419 = vset.pattern.permute.xlu0 0
        %420 = vperm.xlu0 %419, %v374
        %v421 = vpop.permute.xlu0 %420
        %424 = vset.pattern.permute.xlu0 0
        %425 = vperm.xlu0 %424, %v375
        %v426 = vpop.permute.xlu0 %425
        %429 = vset.pattern.permute.xlu0 0
        %430 = vperm.xlu0 %429, %v376
        %v431 = vpop.permute.xlu0 %430
        %434 = vset.pattern.permute.xlu0 0
        %435 = vperm.xlu0 %434, %v377
        %v436 = vpop.permute.xlu0 %435
        %439 = vset.pattern.permute.xlu0 0
        %440 = vperm.xlu0 %439, %v378
        %v441 = vpop.permute.xlu0 %440
        %v443 = vmul.f32 %v406, %v347
        %v444 = vmul.f32 %v411, %v348
        %v445 = vmul.f32 %v416, %v349
        %v446 = vmul.f32 %v421, %v350
        %v447 = vmul.f32 %v426, %v351
        %v448 = vmul.f32 %v431, %v352
        %v449 = vmul.f32 %v436, %v353
        %v450 = vmul.f32 %v441, %v354
        %452 = vset.pattern.permute.xlu0 0
        %453 = vperm.xlu0 %452, %v379
        %v454 = vpop.permute.xlu0 %453
        %457 = vset.pattern.permute.xlu0 0
        %458 = vperm.xlu0 %457, %v380
        %v459 = vpop.permute.xlu0 %458
        %462 = vset.pattern.permute.xlu0 0
        %463 = vperm.xlu0 %462, %v381
        %v464 = vpop.permute.xlu0 %463
        %467 = vset.pattern.permute.xlu0 0
        %468 = vperm.xlu0 %467, %v382
        %v469 = vpop.permute.xlu0 %468
        %472 = vset.pattern.permute.xlu0 0
        %473 = vperm.xlu0 %472, %v383
        %v474 = vpop.permute.xlu0 %473
        %477 = vset.pattern.permute.xlu0 0
        %478 = vperm.xlu0 %477, %v384
        %v479 = vpop.permute.xlu0 %478
        %482 = vset.pattern.permute.xlu0 0
        %483 = vperm.xlu0 %482, %v385
        %v484 = vpop.permute.xlu0 %483
        %487 = vset.pattern.permute.xlu0 0
        %488 = vperm.xlu0 %487, %v386
        %v489 = vpop.permute.xlu0 %488
        %v491 = vmul.f32 %v454, %v355
        %v492 = vmul.f32 %v459, %v356
        %v493 = vmul.f32 %v464, %v357
        %v494 = vmul.f32 %v469, %v358
        %v495 = vmul.f32 %v474, %v359
        %v496 = vmul.f32 %v479, %v360
        %v497 = vmul.f32 %v484, %v361
        %v498 = vmul.f32 %v489, %v362
        %v499 = vadd.f32 %v443, %v491
        %v500 = vadd.f32 %v444, %v492
        %v501 = vadd.f32 %v445, %v493
        %v502 = vadd.f32 %v446, %v494
        %v503 = vadd.f32 %v447, %v495
        %v504 = vadd.f32 %v448, %v496
        %v505 = vadd.f32 %v449, %v497
        %v506 = vadd.f32 %v450, %v498
        %v507 = vadd.f32 %v499, %v500
        %v508 = vadd.f32 %v507, %v501
        %v509 = vadd.f32 %v508, %v502
        %v510 = vadd.f32 %v509, %v503
        %v511 = vadd.f32 %v510, %v504
        %v512 = vadd.f32 %v511, %v505
        %v513 = vadd.f32 %v512, %v506
        %v514 = vrot.slane %v513, 4
        %v515 = vadd.f32 %v513, %v514
        %v516 = vrot.slane %v515, 2
        %v517 = vadd.f32 %v515, %v516
        %v518 = vrot.slane %v517, 1
        %v519 = vadd.f32 %v517, %v518
        %521 = vset.pattern.permute.xlu0 0
        %522 = vperm.xlu0 %521, %v387
        %v523 = vpop.permute.xlu0 %522
        %526 = vset.pattern.permute.xlu0 0
        %527 = vperm.xlu0 %526, %v388
        %v528 = vpop.permute.xlu0 %527
        %531 = vset.pattern.permute.xlu0 0
        %532 = vperm.xlu0 %531, %v389
        %v533 = vpop.permute.xlu0 %532
        %536 = vset.pattern.permute.xlu0 0
        %537 = vperm.xlu0 %536, %v390
        %v538 = vpop.permute.xlu0 %537
        %541 = vset.pattern.permute.xlu0 0
        %542 = vperm.xlu0 %541, %v391
        %v543 = vpop.permute.xlu0 %542
        %546 = vset.pattern.permute.xlu0 0
        %547 = vperm.xlu0 %546, %v392
        %v548 = vpop.permute.xlu0 %547
        %551 = vset.pattern.permute.xlu0 0
        %552 = vperm.xlu0 %551, %v393
        %v553 = vpop.permute.xlu0 %552
        %556 = vset.pattern.permute.xlu0 0
        %557 = vperm.xlu0 %556, %v394
        %v558 = vpop.permute.xlu0 %557
        %v560 = vmul.f32 %v523, %v347
        %v561 = vmul.f32 %v528, %v348
        %v562 = vmul.f32 %v533, %v349
        %v563 = vmul.f32 %v538, %v350
        %v564 = vmul.f32 %v543, %v351
        %v565 = vmul.f32 %v548, %v352
        %v566 = vmul.f32 %v553, %v353
        %v567 = vmul.f32 %v558, %v354
        %569 = vset.pattern.permute.xlu0 0
        %570 = vperm.xlu0 %569, %v395
        %v571 = vpop.permute.xlu0 %570
        %574 = vset.pattern.permute.xlu0 0
        %575 = vperm.xlu0 %574, %v396
        %v576 = vpop.permute.xlu0 %575
        %579 = vset.pattern.permute.xlu0 0
        %580 = vperm.xlu0 %579, %v397
        %v581 = vpop.permute.xlu0 %580
        %584 = vset.pattern.permute.xlu0 0
        %585 = vperm.xlu0 %584, %v398
        %v586 = vpop.permute.xlu0 %585
        %589 = vset.pattern.permute.xlu0 0
        %590 = vperm.xlu0 %589, %v399
        %v591 = vpop.permute.xlu0 %590
        %594 = vset.pattern.permute.xlu0 0
        %595 = vperm.xlu0 %594, %v400
        %v596 = vpop.permute.xlu0 %595
        %599 = vset.pattern.permute.xlu0 0
        %600 = vperm.xlu0 %599, %v401
        %v601 = vpop.permute.xlu0 %600
        %604 = vset.pattern.permute.xlu0 0
        %605 = vperm.xlu0 %604, %v402
        %v606 = vpop.permute.xlu0 %605
        %v608 = vmul.f32 %v571, %v363
        %v609 = vmul.f32 %v576, %v364
        %v610 = vmul.f32 %v581, %v365
        %v611 = vmul.f32 %v586, %v366
        %v612 = vmul.f32 %v591, %v367
        %v613 = vmul.f32 %v596, %v368
        %v614 = vmul.f32 %v601, %v369
        %v615 = vmul.f32 %v606, %v370
        %v616 = vadd.f32 %v560, %v608
        %v617 = vadd.f32 %v561, %v609
        %v618 = vadd.f32 %v562, %v610
        %v619 = vadd.f32 %v563, %v611
        %v620 = vadd.f32 %v564, %v612
        %v621 = vadd.f32 %v565, %v613
        %v622 = vadd.f32 %v566, %v614
        %v623 = vadd.f32 %v567, %v615
        %v624 = vadd.f32 %v616, %v617
        %v625 = vadd.f32 %v624, %v618
        %v626 = vadd.f32 %v625, %v619
        %v627 = vadd.f32 %v626, %v620
        %v628 = vadd.f32 %v627, %v621
        %v629 = vadd.f32 %v628, %v622
        %v630 = vadd.f32 %v629, %v623
        %v631 = vrot.slane %v630, 4
        %v632 = vadd.f32 %v630, %v631
        %v633 = vrot.slane %v632, 2
        %v634 = vadd.f32 %v632, %v633
        %v635 = vrot.slane %v634, 1
        %v636 = vadd.f32 %v634, %v635
        %v637 = vld [vmem:[%s346] sm:$0x1]
        %v638 = vsub.f32 1.0, %v637
        %v639 = vmul.f32 %v638, -1e+30
        %v640 = vadd.f32 %v519, %v639
        %641 = vst [vmem:[%s324] sm:$0x1] %v640
        %v642 = vadd.f32 %v636, %v639
        %643 = vst [vmem:[%s324 + $0x1] sm:$0x1] %v642
        %s644 = sand.u32 %s177, 1
        %s645 = scalar_lea.sflag [#allocation4], %s644
        %s646 = sand.u32 %s177, 1
        %s647 = smul.addr %s646, 2
        %s648 = scalar_lea.vmem [#allocation5], %s647
        // Predicated region
        $region45: #{tpu_custom_call.1} parent=39 // pred_check
          %p649 = pneg %p187
        $region46: #{tpu_custom_call.1} parent=39 // pred_check_branch
          %651 = sbr.rel (%p649) target = $region48
        $region47: #{tpu_custom_call.1} parent=39 // pred_region
          %s653 = ssub.s32 32, 32
          %654 = vsyncadd %s645, %s653
          %s655 = sadd.s32 %s27, %s26
          %s656 = smul.addr %s655, 32
          %s657 = scalar_lea.hbm %s5, %s656
          %s659 = sshll.u32 %s648, 4
          %s660 = int_to_ptr.vmem [resolvable:$true] %s659
          %662 = dma.vmem_to_hbm [thread:$0]  %s660, 32, %s657, %s645
        $region48: #{tpu_custom_call.1} parent=39 // pred_fallthru
          _
      $region40: #{tpu_custom_call.1} parent=5 // pred_fallthru
        _
      %p663 = scmp.le.s32.totalorder 2, %s17
      // Predicated region
      $region49: #{tpu_custom_call.1} parent=5 // pred_check
        %p664 = pneg %p663
      $region50: #{tpu_custom_call.1} parent=5 // pred_check_branch
        %666 = sbr.rel (%p664) target = $region52
      $region51: #{tpu_custom_call.1} parent=5 // pred_region
        %s667 = ssub.s32 %s17, 2
        // Predicated region
        $region53: #{tpu_custom_call.1} parent=51 // pred_check
          %p668 = pneg %p193
        $region54: #{tpu_custom_call.1} parent=51 // pred_check_branch
          %670 = sbr.rel (%p668) target = $region56
        $region55: #{tpu_custom_call.1} parent=51 // pred_region
          %s671 = sand.u32 %s178, 1
          %s672 = scalar_lea.sflag [#allocation4], %s671
          %s673 = sand.u32 %s178, 1
          %s674 = smul.addr %s673, 2
          %s675 = scalar_lea.vmem [#allocation5], %s674
          %676 = dma.done %s672, 32
        $region56: #{tpu_custom_call.1} parent=51 // pred_fallthru
          _
      $region52: #{tpu_custom_call.1} parent=5 // pred_fallthru
        _
    $region6: #{tpu_custom_call.1} parent=1 // loop_footer
      %s21 = sadd.s32 1, %s17
    $region7: #{tpu_custom_call.1} parent=1 // loop_footer_branch
      %16 = sbr.rel target = $region3
    $region8: #{tpu_custom_call.1} parent=1 // loop_exit
      _
    %677 = vsyncpa [#allocation3], 1
    %s678 = scalar_lea.sflag [#allocation3], 1
    %679 = vsyncpa %s678, 1
    %680 = vsyncpa [#allocation4], 1
    %s681 = scalar_lea.sflag [#allocation4], 1
    %682 = vsyncpa %s681, 1

</llo_original>
